<compile_context>
chip_gen: v7x
topology: tpu7x:2x2x1
jax: 0.10.0
libtpu: 0.0.40
codegen_flags: <defaults>
</compile_context>

<pallas_src>
import numpy as np
import jax
import jax.numpy as jnp
from jax.experimental import pallas as pl
from jax.experimental.pallas import tpu as pltpu

SILENCE_VALUE = -11.5129251
DEFAULT_TL = 2048                    # output-frame tile (frames per grid step), multiple of 8
T1_BUCKET = 128                      # phoneme-axis bucket (lane-dense, bounds recompiles)
VMEM_BUDGET = 26 * 1024 * 1024       # working-set cap used when auto-shrinking TL
VMEM_LIMIT = 32 * 1024 * 1024        # explicit scoped-VMEM limit (safe on v5e/v6e/v7x)


def _round_up(x, m):
    return (x + m - 1) // m * m


# ----------------------------- Pallas kernel ------------------------------ #
def _regulate_kernel(len_ref, se_ref, ph_ref, out_ref):
    # len_ref: (B,) int32 in SMEM (scalar prefetch: total frames per batch element)
    # se_ref:  (1, 2, T1p) int32 -- row 0 = start frame, row 1 = end frame of each phoneme
    # ph_ref:  (1, T1p, E)       -- phoneme hiddens (zero rows for T1 padding)
    # out_ref: (1, TL, E)
    b = pl.program_id(0)
    lt = pl.program_id(1)
    TL = out_ref.shape[1]
    tile_start = lt * TL
    batch_len = len_ref[b]

    @pl.when(tile_start >= batch_len)
    def _():
        # Whole tile lies past this utterance's true length -> zero-fill, skip the matmul.
        out_ref[...] = jnp.zeros_like(out_ref)

    @pl.when(tile_start < batch_len)
    def _():
        st = se_ref[0, 0:1, :]                                   # (1, T1p)
        en = se_ref[0, 1:2, :]                                   # (1, T1p)
        ph = ph_ref[0]                                           # (T1p, E)
        T1 = st.shape[1]
        # mask[l, j] == 1 iff output frame (tile_start + l) lies in phoneme j's span.
        l_idx = tile_start + jax.lax.broadcasted_iota(jnp.int32, (TL, T1), 0)
        mask = jnp.logical_and(l_idx >= st, l_idx < en).astype(ph.dtype)   # (TL, T1p)
        # One-hot rows -> the matmul is an exact row copy (no accumulation error),
        # so bf16 inputs lose nothing beyond input precision.
        out_ref[0] = jnp.dot(mask, ph,
                             preferred_element_type=jnp.float32).astype(out_ref.dtype)


def _vmem_bytes(tl, t1p, e, itemsize):
    out_buf = 2 * tl * e * itemsize            # double-buffered output blocks
    ph_buf = 2 * t1p * e * itemsize            # double-buffered phoneme blocks
    se_buf = 2 * 8 * t1p * 4                   # start/end blocks (sublane-padded)
    tmp = tl * t1p * (4 + itemsize) + tl * e * 4   # iota + mask + f32 dot result
    return out_buf + ph_buf + se_buf + tmp


def regulate(phoneme, durations, out_len, tl=DEFAULT_TL):
    """phoneme: (B, T1, E), durations: (B, T1) i32, out_len: static python int (exact)."""
    B, T1, E = phoneme.shape
    durations = durations.astype(jnp.int32)
    starts = jnp.cumsum(durations, axis=-1) - durations          # exclusive prefix sum
    ends = starts + durations
    se = jnp.stack([starts, ends], axis=1)                       # (B, 2, T1) int32
    lengths = ends[:, -1].astype(jnp.int32)                      # (B,) total frames per batch

    # Bucket the phoneme axis to a multiple of 128: bounds recompiles and fills vreg lanes /
    # MXU K. Padded entries have start == end == 0 (empty span) so they select nothing.
    T1p = _round_up(T1, T1_BUCKET)
    if T1p != T1:
        se = jnp.pad(se, ((0, 0), (0, 0), (0, T1p - T1)))
        phoneme = jnp.pad(phoneme, ((0, 0), (0, T1p - T1), (0, 0)))

    # Pick the frame tile: start large (amortize per-step overhead), halve until the VMEM
    # working set fits; collapse to a single full-dim tile for short utterances. No frame or
    # lane padding of the OUTPUT -> it is written once at its exact final shape (no slice copy).
    itemsize = jnp.dtype(phoneme.dtype).itemsize
    TL = max(8, (tl // 8) * 8)
    while TL > 8 and _vmem_bytes(TL, T1p, E, itemsize) > VMEM_BUDGET:
        TL = max(8, (TL // 2 // 8) * 8)
    if out_len <= TL:
        TL = out_len                       # block == full frame axis (always a legal block)
    grid_l = pl.cdiv(out_len, TL)          # boundary tile (if any) is a partial block

    out = pl.pallas_call(
        _regulate_kernel,
        out_shape=jax.ShapeDtypeStruct((B, out_len, E), phoneme.dtype),
        grid_spec=pltpu.PrefetchScalarGridSpec(
            num_scalar_prefetch=1,                               # lengths -> SMEM
            grid=(B, grid_l),
            in_specs=[
                # index_maps independent of lt: se / phoneme blocks stay resident per batch
                # element instead of being re-DMA'd for every frame tile.
                pl.BlockSpec((1, 2, T1p), lambda b, lt, lens: (b, 0, 0)),   # starts/ends
                pl.BlockSpec((1, T1p, E), lambda b, lt, lens: (b, 0, 0)),   # phonemes
            ],
            out_specs=pl.BlockSpec((1, TL, E), lambda b, lt, lens: (b, lt, 0)),
        ),
        compiler_params=pltpu.CompilerParams(
            dimension_semantics=("parallel", "parallel"),
            vmem_limit_bytes=VMEM_LIMIT),
    )(lengths, se, phoneme)
    return out


# --------------------------- Module wrapper -------------------------------- #
class LengthRegulator:
    def __init__(self, emb_size: int, groups: int):
        self.emb_size = emb_size
        self.groups = groups
        # TODO(synk): DurationPredictor architecture is not provided in the reference; using a
        # deterministic linear stand-in (emb_size -> 1). Its output only feeds
        # batch["durations_pred"]; training-mode regulation uses batch["durations"], as in the
        # reference.
        k = jnp.arange(emb_size, dtype=jnp.float32)
        self.dp_w = (jnp.sin(0.1 * k) * 0.05).reshape(emb_size, 1)
        self.dp_b = jnp.float32(0.3)
        self.silence_token = jnp.full((emb_size,), SILENCE_VALUE, jnp.float32)

    def __call__(self, batch, training=True):
        phoneme = batch["hiddens"]                                        # (B, T, E)
        B, T, E = phoneme.shape

        durations_pred = ((phoneme @ self.dp_w.astype(phoneme.dtype)).squeeze(-1)
                          + jnp.asarray(self.dp_b, phoneme.dtype))        # (B, T)
        batch["durations_pred"] = durations_pred

        silence = jnp.broadcast_to(self.silence_token.astype(phoneme.dtype), (B, 1, E))
        phoneme = jnp.concatenate([phoneme, silence], axis=1)             # (B, T+1, E)

        if not training:
            durations = jnp.expm1(durations_pred)
        else:
            durations = batch["durations"]
        durations = durations.astype(jnp.int32)
        melspec_length = batch["melspec_length"]
        silence_duration = (jnp.asarray(melspec_length, jnp.int32)
                            - durations.sum(-1)).reshape(-1, 1)
        durations = jnp.concatenate([durations, silence_duration], axis=1).astype(jnp.int32)

        # After the silence fill, per-batch totals equal melspec_length exactly, so the
        # PyTorch output length durations.sum(-1).max() == max(melspec_length). Resolving it
        # from batch metadata (not the kernel's own device compute) avoids blocking the
        # dispatch pipeline; output length still varies per call -> a few recompiles.
        out_len = int(np.max(np.asarray(melspec_length)))

        batch["hiddens"] = regulate(phoneme, durations, out_len)          # (B, L, E)
        return batch


# ------------------------------- Demo ------------------------------------- #
if __name__ == "__main__":
    key = jax.random.PRNGKey(0)
    B, T, E, groups = 2, 8, 32, 4
    k1, k2 = jax.random.split(key)

    hiddens = jax.random.normal(k1, (B, T, E), jnp.float32)
    durations = jax.random.randint(k2, (B, T), 1, 5).astype(jnp.int32)    # per-phoneme frames
    melspec_length = durations.sum(-1) + jnp.array([3, 5], jnp.int32)     # adds silence frames

    batch = {"hiddens": hiddens, "durations": durations, "melspec_length": melspec_length}
    lr = LengthRegulator(E, groups)
    out_batch = lr(dict(batch), training=True)
    out = jax.block_until_ready(out_batch["hiddens"])

    # ---- reference check (mirrors the PyTorch `regulate` loop exactly) ----
    dur_np = np.concatenate(
        [np.asarray(durations),
         np.asarray(melspec_length - durations.sum(-1)).reshape(-1, 1)], axis=1).astype(np.int32)
    ph_np = np.concatenate(
        [np.asarray(hiddens), np.full((B, 1, E), SILENCE_VALUE, np.float32)], axis=1)
    L = int(dur_np.sum(-1).max())
    mask = np.zeros((B, T + 1, L), np.float32)
    for i in range(B):
        cur = 0
        for j in range(T + 1):
            mask[i, j, cur:cur + dur_np[i, j]] = 1.0
            cur += dur_np[i, j]
    ref = np.einsum("bte,btl->ble", ph_np, mask)

    assert out.shape == (B, L, E), (out.shape, (B, L, E))
    np.testing.assert_allclose(np.asarray(out), ref, atol=1e-4, rtol=1e-4)
    print("KERNEL_OK")
</pallas_src>

<mosaic_0001>
module attributes {stable_mosaic.version = 11 : i64} {
  func.func @_regulate_kernel(%arg0: i32, %arg1: i32, %arg2: memref<2xi32, #tpu.memory_space<smem>>, %arg3: memref<1x2x128xi32, #tpu.memory_space<vmem>>, %arg4: memref<1x128x32xf32, #tpu.memory_space<vmem>>, %arg5: memref<1x26x32xf32, #tpu.memory_space<vmem>>) attributes {dimension_semantics = [#tpu.dimension_semantics<parallel>, #tpu.dimension_semantics<parallel>], iteration_bounds = array<i64: 2, 1>, scalar_prefetch = 1 : i64, scratch_operands = 0 : i64, tpu.core_type = #tpu.core_type<tc>, window_params = [{transform_indices = @transform_0, window_bounds = array<i64: 1, 2, 128>}, {transform_indices = @transform_1, window_bounds = array<i64: 1, 128, 32>}, {transform_indices = @transform_2, window_bounds = array<i64: 1, 26, 32>}]} {
    %c26_i32 = arith.constant 26 : i32
    %0 = arith.muli %arg1, %c26_i32 : i32
    %1 = arith.index_cast %arg0 : i32 to index
    %2 = memref.load %arg2[%1] : memref<2xi32, #tpu.memory_space<smem>>
    %3 = arith.cmpi sge, %0, %2 : i32
    %4 = arith.extui %3 : i1 to i32
    %c0_i32 = arith.constant 0 : i32
    %5 = arith.cmpi ne, %4, %c0_i32 : i32
    scf.if %5 {
      %cst = arith.constant 0.000000e+00 : f32
      %9 = vector.broadcast %cst : f32 to vector<1x26x32xf32>
      %c0 = arith.constant 0 : index
      %c0_1 = arith.constant 0 : index
      %c0_2 = arith.constant 0 : index
      %10 = vector.load %arg5[%c0, %c0_1, %c0_2] : memref<1x26x32xf32, #tpu.memory_space<vmem>>, vector<1x26x32xf32>
      tpu.vector_store %arg5[%c0, %c0_1, %c0_2], %9 {strides = array<i32>} : memref<1x26x32xf32, #tpu.memory_space<vmem>>, vector<1x26x32xf32>,
    } else {
    }
    %6 = arith.cmpi slt, %0, %2 : i32
    %7 = arith.extui %6 : i1 to i32
    %c0_i32_0 = arith.constant 0 : i32
    %8 = arith.cmpi ne, %7, %c0_i32_0 : i32
    scf.if %8 {
      %c0 = arith.constant 0 : index
      %c0_1 = arith.constant 0 : index
      %c0_2 = arith.constant 0 : index
      %9 = vector.load %arg3[%c0, %c0_1, %c0_2] : memref<1x2x128xi32, #tpu.memory_space<vmem>>, vector<1x1x128xi32>
      %10 = vector.shape_cast %9 : vector<1x1x128xi32> to vector<1x128xi32>
      %c0_3 = arith.constant 0 : index
      %c1 = arith.constant 1 : index
      %c0_4 = arith.constant 0 : index
      %11 = vector.load %arg3[%c0_3, %c1, %c0_4] : memref<1x2x128xi32, #tpu.memory_space<vmem>>, vector<1x1x128xi32>
      %12 = vector.shape_cast %11 : vector<1x1x128xi32> to vector<1x128xi32>
      %c0_5 = arith.constant 0 : index
      %c0_6 = arith.constant 0 : index
      %c0_7 = arith.constant 0 : index
      %13 = vector.load %arg4[%c0_5, %c0_6, %c0_7] : memref<1x128x32xf32, #tpu.memory_space<vmem>>, vector<1x128x32xf32>
      %14 = vector.shape_cast %13 : vector<1x128x32xf32> to vector<128x32xf32>
      %15 = tpu.iota {dimensions = array<i32: 0>} : vector<26x128xi32>
      %16 = vector.broadcast %0 : i32 to vector<26x128xi32>
      %17 = arith.addi %16, %15 : vector<26x128xi32>
      %18 = vector.broadcast %10 : vector<1x128xi32> to vector<26x128xi32>
      %19 = arith.cmpi sge, %17, %18 : vector<26x128xi32>
      %20 = vector.broadcast %12 : vector<1x128xi32> to vector<26x128xi32>
      %21 = arith.cmpi slt, %17, %20 : vector<26x128xi32>
      %22 = arith.andi %19, %21 : vector<26x128xi1>
      %23 = arith.extui %22 : vector<26x128xi1> to vector<26x128xi32>
      %24 = arith.sitofp %23 : vector<26x128xi32> to vector<26x128xf32>
      %cst = arith.constant dense<0.000000e+00> : vector<26x32xf32>
      %25 = tpu.matmul %24, %14, %cst {dimension_numbers = #tpu.dot_dimension_numbers<[1], [0], [0], [1], [0, 0, 1, 1], [], []>} : vector<26x128xf32>, vector<128x32xf32>, vector<26x32xf32> -> vector<26x32xf32>
      %c0_8 = arith.constant 0 : index
      %c0_9 = arith.constant 0 : index
      %c0_10 = arith.constant 0 : index
      %26 = vector.load %arg5[%c0_8, %c0_9, %c0_10] : memref<1x26x32xf32, #tpu.memory_space<vmem>>, vector<1x26x32xf32>
      %27 = vector.shape_cast %26 : vector<1x26x32xf32> to vector<26x32xf32>
      %28 = vector.shape_cast %25 : vector<26x32xf32> to vector<1x26x32xf32>
      tpu.vector_store %arg5[%c0_8, %c0_9, %c0_10], %28 {strides = array<i32>} : memref<1x26x32xf32, #tpu.memory_space<vmem>>, vector<1x26x32xf32>,
    } else {
    }
    return
  }
  func.func @transform_0(%arg0: i32, %arg1: i32, %arg2: memref<2xi32, #tpu.memory_space<smem>>) -> (i32, i32, i32) {
    %c0_i32 = arith.constant 0 : i32
    %c0_i32_0 = arith.constant 0 : i32
    %c0_i32_1 = arith.constant 0 : i32
    return %arg0, %c0_i32, %c0_i32_0 : i32, i32, i32
  }
  func.func @transform_1(%arg0: i32, %arg1: i32, %arg2: memref<2xi32, #tpu.memory_space<smem>>) -> (i32, i32, i32) {
    %c0_i32 = arith.constant 0 : i32
    %c0_i32_0 = arith.constant 0 : i32
    %c0_i32_1 = arith.constant 0 : i32
    return %arg0, %c0_i32, %c0_i32_0 : i32, i32, i32
  }
  func.func @transform_2(%arg0: i32, %arg1: i32, %arg2: memref<2xi32, #tpu.memory_space<smem>>) -> (i32, i32, i32) {
    %c0_i32 = arith.constant 0 : i32
    %c0_i32_0 = arith.constant 0 : i32
    return %arg0, %arg1, %c0_i32 : i32, i32, i32
  }
}

</mosaic_0001>

<llo_original>
// kernel: tpu_custom_call.1
$region0: #{tpu_custom_call.1}
  #allocation0 [shape = 'u32[]', space=smem, size = 0x4, offset = 0x4, fixed_abs, tag = 'smem constant byte address 0x4 - core index']
  #allocation1 [shape = 'u32[144,128]{1,0:T(1,128)}', space=vmem, size = 0x12000, scoped, tag = 'internal scratch']
  #allocation2 [shape = 's32[1]{0}', space=sflag, size = 0x4, scoped, tag = 'scoped memory for tpu_custom_call.1']
  #allocation3 [shape = 'u8[512]{0}', space=smem, size = 0x200, scoped, tag = 'prefetched SMEM operand 0']
  %s0 = inlined_call_operand.vmem [shape: s32[2], index: 0, kind: input, shape index: {}]
  %s1 = inlined_call_operand.vmem [shape: s32[2,2,128], index: 1, kind: input, shape index: {}]
  %s2 = inlined_call_operand.vmem [shape: f32[2,128,32], index: 2, kind: input, shape index: {}]
  %s3 = inlined_call_operand.vmem [shape: f32[2,26,32], index: 3, kind: output, shape index: {}]
  %s4 = sld [smem:[#allocation0]]
  $region49: #{tpu_custom_call.1} parent=0
    _
  %s6 = ssub.s32 1, %s4
  %s7 = scalar_select 0, %s6, %s4
  %s8 = sshll.u32 %s0, 4
  %s9 = int_to_ptr.vmem [resolvable:$true] %s8
  %11 = dma.vmem_to_smem %s9, 16, [#allocation3], [#allocation2]
  %12 = dma.done [#allocation2], 16
  %13 = sfence
  loop: start=0, step=1, limit=4
  $region2: #{tpu_custom_call.1} parent=0 // loop_pre_header
    _
  $region3: #{tpu_custom_call.1} parent=0 // loop_header
    %s15 = sphi 0, %s19
    %p16 = scmp.ge.s32.totalorder %s15, 4
    %s22 = sphi 0, %s34
    %s23 = sphi 0, %s30
    %s24 = sphi 0, %s22
    %s25 = sphi 0, %s23
    %s26 = sphi 0, %s24
    %s27 = sphi 0, %s25
    %s37 = sphi 0, %s39
    %s40 = sphi 0, %s37
    %s41 = sphi 0, %s40
    %s57 = sphi 0, %s41
    %s63 = sphi 0, %s65
    %s66 = sphi 0, %s63
    %s67 = sphi 0, %s66
    %s83 = sphi 0, %s67
    %s91 = sphi 0, %s93
    %s94 = sphi 0, %s91
    %s95 = sphi 0, %s94
    %s111 = sphi 0, %s95
  $region4: #{tpu_custom_call.1} parent=0 // loop_header_branch
    %18 = sbr.rel (%p16) target = $region8
  $region5: #{tpu_custom_call.1} parent=0 // loop_body
    %s20 = ssub.s32 %s15, 1
    %s21 = ssub.s32 %s15, 2
    %s28 = sadd.s32 1, %s23
    %p29 = scmp.ge.s32.totalorder %s28, 1
    %s30 = scalar_select %p29, 0, %s28
    %s31 = sadd.s32 1, %s22
    %s32 = scalar_select %p29, %s31, %s22
    %p33 = scmp.ge.s32.totalorder %s32, 2
    %s34 = scalar_select %p33, 0, %s32
    %s35 = ssub.s32 %s22, %s34
    %p36 = scmp.eq.s32.totalorder %s35, 0
    %s38 = sadd.s32 %s37, 1
    %s39 = scalar_select %p36, %s37, %s38
    %p42 = pneg %p36
    %p43 = scmp.eq.s32.totalorder %s15, 1
    %p44 = por %p42, %p43
    %p45 = scmp.ne.s32.totalorder %s37, %s40
    %p46 = scmp.eq.s32.totalorder %s15, 0
    %p47 = por %p45, %p46
    %p48 = scmp.ne.s32.totalorder %s37, %s40
    %p49 = scmp.eq.s32.totalorder %s20, 1
    %p50 = por %p48, %p49
    %p51 = scmp.ne.s32.totalorder %s40, %s41
    %p52 = scmp.eq.s32.totalorder %s20, 0
    %p53 = por %p51, %p52
    %p54 = scmp.ne.s32.totalorder %s40, %s41
    %p55 = scmp.eq.s32.totalorder %s21, 1
    %p56 = por %p54, %p55
    %p58 = scmp.ne.s32.totalorder %s41, %s57
    %p59 = scmp.eq.s32.totalorder %s21, 0
    %p60 = por %p58, %p59
    %s61 = ssub.s32 %s22, %s34
    %p62 = scmp.eq.s32.totalorder %s61, 0
    %s64 = sadd.s32 %s63, 1
    %s65 = scalar_select %p62, %s63, %s64
    %p68 = pneg %p62
    %p69 = scmp.eq.s32.totalorder %s15, 1
    %p70 = por %p68, %p69
    %p71 = scmp.ne.s32.totalorder %s63, %s66
    %p72 = scmp.eq.s32.totalorder %s15, 0
    %p73 = por %p71, %p72
    %p74 = scmp.ne.s32.totalorder %s63, %s66
    %p75 = scmp.eq.s32.totalorder %s20, 1
    %p76 = por %p74, %p75
    %p77 = scmp.ne.s32.totalorder %s66, %s67
    %p78 = scmp.eq.s32.totalorder %s20, 0
    %p79 = por %p77, %p78
    %p80 = scmp.ne.s32.totalorder %s66, %s67
    %p81 = scmp.eq.s32.totalorder %s21, 1
    %p82 = por %p80, %p81
    %p84 = scmp.ne.s32.totalorder %s67, %s83
    %p85 = scmp.eq.s32.totalorder %s21, 0
    %p86 = por %p84, %p85
    %s87 = ssub.s32 %s22, %s34
    %s88 = ssub.s32 %s23, %s30
    %s89 = sor.u32 %s87, %s88
    %p90 = scmp.eq.s32.totalorder %s89, 0
    %s92 = sadd.s32 %s91, 1
    %s93 = scalar_select %p90, %s91, %s92
    %p96 = pneg %p90
    %p97 = scmp.eq.s32.totalorder %s15, 1
    %p98 = por %p96, %p97
    %p99 = scmp.ne.s32.totalorder %s91, %s94
    %p100 = scmp.eq.s32.totalorder %s15, 0
    %p101 = por %p99, %p100
    %p102 = scmp.ne.s32.totalorder %s91, %s94
    %p103 = scmp.eq.s32.totalorder %s20, 1
    %p104 = por %p102, %p103
    %p105 = scmp.ne.s32.totalorder %s94, %s95
    %p106 = scmp.eq.s32.totalorder %s20, 0
    %p107 = por %p105, %p106
    %p108 = scmp.ne.s32.totalorder %s94, %s95
    %p109 = scmp.eq.s32.totalorder %s21, 1
    %p110 = por %p108, %p109
    %p112 = scmp.ne.s32.totalorder %s95, %s111
    %p113 = scmp.eq.s32.totalorder %s21, 0
    %p114 = por %p112, %p113
    %p115 = scmp.le.s32.totalorder 1, %s15
    %p116 = scmp.lt.s32.totalorder %s15, 3
    %p117 = pnand %p115, %p116
    %p118 = pneg %p117
    // Predicated region
    $region9: #{tpu_custom_call.1} parent=5 // pred_check
      _
    $region10: #{tpu_custom_call.1} parent=5 // pred_check_branch
      %120 = sbr.rel (%p117) target = $region12
    $region11: #{tpu_custom_call.1} parent=5 // pred_region
      %s121 = ssub.s32 %s15, 1
    $region12: #{tpu_custom_call.1} parent=5 // pred_fallthru
      _
    %p122 = scmp.lt.s32.totalorder %s15, 2
    // Predicated region
    $region13: #{tpu_custom_call.1} parent=5 // pred_check
      %p123 = pneg %p122
    $region14: #{tpu_custom_call.1} parent=5 // pred_check_branch
      %125 = sbr.rel (%p123) target = $region16
    $region15: #{tpu_custom_call.1} parent=5 // pred_region
      // Predicated region
      $region17: #{tpu_custom_call.1} parent=15 // pred_check
        %p126 = pneg %p47
      $region18: #{tpu_custom_call.1} parent=15 // pred_check_branch
        %128 = sbr.rel (%p126) target = $region20
      $region19: #{tpu_custom_call.1} parent=15 // pred_region
        %p129 = scmp.lt.s32.totalorder %s22, 1
        %s130 = scalar_select %p129, %s22, 1
        %s131 = smul.addr %s130, 2
        %s132 = scalar_lea.vmem %s1, %s131
      $region20: #{tpu_custom_call.1} parent=15 // pred_fallthru
        _
      // Predicated region
      $region21: #{tpu_custom_call.1} parent=15 // pred_check
        %p133 = pneg %p73
      $region22: #{tpu_custom_call.1} parent=15 // pred_check_branch
        %135 = sbr.rel (%p133) target = $region24
      $region23: #{tpu_custom_call.1} parent=15 // pred_region
        %p136 = scmp.lt.s32.totalorder %s22, 1
        %s137 = scalar_select %p136, %s22, 1
        %s138 = smul.addr %s137, 16
        %s139 = smul.addr %s138, 8
        %s140 = scalar_lea.vmem %s2, %s139
      $region24: #{tpu_custom_call.1} parent=15 // pred_fallthru
        _
    $region16: #{tpu_custom_call.1} parent=5 // pred_fallthru
      _
    %p141 = scmp.le.s32.totalorder 1, %s15
    %p142 = scmp.lt.s32.totalorder %s15, 3
    %p143 = pnand %p141, %p142
    %p144 = pneg %p143
    // Predicated region
    $region25: #{tpu_custom_call.1} parent=5 // pred_check
      _
    $region26: #{tpu_custom_call.1} parent=5 // pred_check_branch
      %146 = sbr.rel (%p143) target = $region28
    $region27: #{tpu_custom_call.1} parent=5 // pred_region
      %s147 = ssub.s32 %s15, 1
      %p148 = scmp.lt.s32.totalorder %s24, 1
      %s149 = scalar_select %p148, %s24, 1
      %s150 = smul.addr %s149, 2
      %s151 = scalar_lea.vmem %s1, %s150
      %p152 = pneg %p53
      %p153 = pneg %p50
      %p154 = scmp.lt.s32.totalorder %s24, 1
      %s155 = scalar_select %p154, %s24, 1
      %s156 = smul.addr %s155, 16
      %s157 = smul.addr %s156, 8
      %s158 = scalar_lea.vmem %s2, %s157
      %p159 = pneg %p79
      %p160 = pneg %p76
      %p161 = pneg %p107
      %p162 = pneg %p104
      %s163 = smul.u32 4, %s25
      %p164 = scmp.lt.s32.totalorder %s24, 1
      %s165 = scalar_select %p164, %s24, 1
      %p166 = scmp.lt.s32.totalorder %s163, 3
      %s167 = scalar_select %p166, %s163, 3
      %s168 = smul.addr %s165, 4
      %s169 = sadd.s32 %s167, %s168
      %s170 = smul.addr %s169, 8
      %s171 = scalar_lea.vmem %s3, %s170
      %p172 = scmp.lt.s32.totalorder %s24, 1
      %s173 = scalar_select %p172, %s24, 1
      %s174 = smul.addr %s173, 2
      %s175 = scalar_lea.vmem %s1, %s174
      %p176 = scmp.lt.s32.totalorder %s24, 1
      %s177 = scalar_select %p176, %s24, 1
      %s178 = smul.addr %s177, 16
      %s179 = smul.addr %s178, 8
      %s180 = scalar_lea.vmem %s2, %s179
      %s181 = smul.u32 4, %s25
      %p182 = scmp.lt.s32.totalorder %s24, 1
      %s183 = scalar_select %p182, %s24, 1
      %p184 = scmp.lt.s32.totalorder %s181, 3
      %s185 = scalar_select %p184, %s181, 3
      %s186 = smul.addr %s183, 4
      %s187 = sadd.s32 %s185, %s186
      %s188 = smul.addr %s187, 8
      %s189 = scalar_lea.vmem %s3, %s188
      %s190 = smul.u32 4, %s25
      %s191 = smul.u32 %s25, 26
      %s192 = sld [smem:[#allocation3 + %s24]]
      %p193 = scmp.ge.s32.totalorder %s191, %s192
      // Predicated region
      $region29: #{tpu_custom_call.1} parent=27 // pred_check
        %p194 = pneg %p193
      $region30: #{tpu_custom_call.1} parent=27 // pred_check_branch
        %196 = sbr.rel (%p194) target = $region32
      $region31: #{tpu_custom_call.1} parent=27 // pred_region
        %vm197 = vcmask 261120
        %198 = vst.msk [vmem:[%s189] sm:$0xff] %vm197, 0.0
        %199 = vst.msk [vmem:[%s189 + $0x8] sm:$0xff] %vm197, 0.0
        %200 = vst.msk [vmem:[%s189 + $0x10] sm:$0xff] %vm197, 0.0
        %vm201 = vcmask 254976
        %202 = vst.msk [vmem:[%s189 + $0x18] sm:$0x3] %vm201, 0.0
      $region32: #{tpu_custom_call.1} parent=27 // pred_fallthru
        _
      %p203 = scmp.lt.s32.totalorder %s191, %s192
      // Predicated region
      $region33: #{tpu_custom_call.1} parent=27 // pred_check
        %p204 = pneg %p203
      $region34: #{tpu_custom_call.1} parent=27 // pred_check_branch
        %206 = sbr.rel (%p204) target = $region36
      $region35: #{tpu_custom_call.1} parent=27 // pred_region
        %v207 = vld [vmem:[%s175] sm:$0x1]
        %v208 = vld [vmem:[%s175 + $0x1] sm:$0x1]
        %v209 = vld [vmem:[%s180] sm:$0xff]
        %v210 = vld [vmem:[%s180 + $0x8] sm:$0xff]
        %v211 = vld [vmem:[%s180 + $0x10] sm:$0xff]
        %v212 = vld [vmem:[%s180 + $0x18] sm:$0xff]
        %v213 = vld [vmem:[%s180 + $0x20] sm:$0xff]
        %v214 = vld [vmem:[%s180 + $0x28] sm:$0xff]
        %v215 = vld [vmem:[%s180 + $0x30] sm:$0xff]
        %v216 = vld [vmem:[%s180 + $0x38] sm:$0xff]
        %v217 = vld [vmem:[%s180 + $0x40] sm:$0xff]
        %v218 = vld [vmem:[%s180 + $0x48] sm:$0xff]
        %v219 = vld [vmem:[%s180 + $0x50] sm:$0xff]
        %v220 = vld [vmem:[%s180 + $0x58] sm:$0xff]
        %v221 = vld [vmem:[%s180 + $0x60] sm:$0xff]
        %v222 = vld [vmem:[%s180 + $0x68] sm:$0xff]
        %v223 = vld [vmem:[%s180 + $0x70] sm:$0xff]
        %v224 = vld [vmem:[%s180 + $0x78] sm:$0xff]
        %v225 = vlaneseq
        %v226 = vshrl.u32 %v225, 7
        %v227 = vadd.s32 %v226, 8
        %v228 = vadd.s32 %v226, 16
        %v229 = vadd.s32 %v226, 24
        %v230 = vstv %s191
        %v231 = vadd.s32 %v230, %v226
        %v232 = vadd.s32 %v230, %v227
        %v233 = vadd.s32 %v230, %v228
        %v234 = vadd.s32 %v230, %v229
        %v235 = vlaneseq
        %v236 = vshrl.u32 %v235, 7
        %v237 = vsub.s32 0, %v236
        %v238 = vrot.slane %v207, %v237
        %vm239 = vcmp.ge.s32.totalorder %v231, %v238
        %vm240 = vcmp.ge.s32.totalorder %v232, %v238
        %vm241 = vcmp.ge.s32.totalorder %v233, %v238
        %vm242 = vcmp.ge.s32.totalorder %v234, %v238
        %v243 = vlaneseq
        %v244 = vshrl.u32 %v243, 7
        %v245 = vsub.s32 0, %v244
        %v246 = vrot.slane %v208, %v245
        %vm247 = vcmp.lt.s32.totalorder %v231, %v246
        %vm248 = vcmp.lt.s32.totalorder %v232, %v246
        %vm249 = vcmp.lt.s32.totalorder %v233, %v246
        %vm250 = vcmp.lt.s32.totalorder %v234, %v246
        %vm251 = vmand %vm239, %vm247
        %vm252 = vmand %vm240, %vm248
        %vm253 = vmand %vm241, %vm249
        %vm254 = vmand %vm242, %vm250
        %v255 = vsel %vm251, 1, 0
        %v256 = vsel %vm252, 1, 0
        %v257 = vsel %vm253, 1, 0
        %v258 = vsel %vm254, 1, 0
        %v259 = vcvt.s32.f32 %v255
        %v260 = vcvt.s32.f32 %v256
        %v261 = vcvt.s32.f32 %v257
        %v262 = vcvt.s32.f32 %v258
        %263 = vmatprep.subr.mxu0 0.0
        %264 = vmatpush1.msra.mxu0 %v209
        %265 = vmatprep.subr.mxu0 0.0
        %266 = vmatpush1.msra.mxu0 %v210
        %267 = vmatprep.subr.mxu0 0.0
        %268 = vmatpush1.msra.mxu0 %v211
        %269 = vmatprep.subr.mxu0 0.0
        %270 = vmatpush1.msra.mxu0 %v212
        %271 = vmatprep.subr.mxu0 0.0
        %272 = vmatpush1.msra.mxu0 %v213
        %273 = vmatprep.subr.mxu0 0.0
        %274 = vmatpush1.msra.mxu0 %v214
        %275 = vmatprep.subr.mxu0 0.0
        %276 = vmatpush1.msra.mxu0 %v215
        %277 = vmatprep.subr.mxu0 0.0
        %278 = vmatpush1.msra.mxu0 %v216
        %279 = vmatprep.subr.mxu0 0.0
        %280 = vmatpush1.msra.mxu0 %v217
        %281 = vmatprep.subr.mxu0 0.0
        %282 = vmatpush1.msra.mxu0 %v218
        %283 = vmatprep.subr.mxu0 0.0
        %284 = vmatpush1.msra.mxu0 %v219
        %285 = vmatprep.subr.mxu0 0.0
        %286 = vmatpush1.msra.mxu0 %v220
        %287 = vmatprep.subr.mxu0 0.0
        %288 = vmatpush1.msra.mxu0 %v221
        %289 = vmatprep.subr.mxu0 0.0
        %290 = vmatpush1.msra.mxu0 %v222
        %291 = vmatprep.subr.mxu0 0.0
        %292 = vmatpush1.msra.mxu0 %v223
        %293 = vmatprep.subr.mxu0 0.0
        %294 = vmatpush1.msra.mxu0 %v224
        %295 = vmatprep.subr.mxu0 0.0
        %296 = vmatpush1.msra.mxu0 0.0
        %297 = vmatprep.subr.mxu0 0.0
        %298 = vmatpush1.msra.mxu0 0.0
        %299 = vmatprep.subr.mxu0 0.0
        %300 = vmatpush1.msra.mxu0 0.0
        %301 = vmatprep.subr.mxu0 0.0
        %302 = vmatpush1.msra.mxu0 0.0
        %303 = vmatprep.subr.mxu0 0.0
        %304 = vmatpush1.msra.mxu0 0.0
        %305 = vmatprep.subr.mxu0 0.0
        %306 = vmatpush1.msra.mxu0 0.0
        %307 = vmatprep.subr.mxu0 0.0
        %308 = vmatpush1.msra.mxu0 0.0
        %309 = vmatprep.subr.mxu0 0.0
        %310 = vmatpush1.msra.mxu0 0.0
        %311 = vmatprep.subr.mxu0 0.0
        %312 = vmatpush1.msra.mxu0 0.0
        %313 = vmatprep.subr.mxu0 0.0
        %314 = vmatpush1.msra.mxu0 0.0
        %315 = vmatprep.subr.mxu0 0.0
        %316 = vmatpush1.msra.mxu0 0.0
        %317 = vmatprep.subr.mxu0 0.0
        %318 = vmatpush1.msra.mxu0 0.0
        %319 = vmatprep.subr.mxu0 0.0
        %320 = vmatpush1.msra.mxu0 0.0
        %321 = vmatprep.subr.mxu0 0.0
        %322 = vmatpush1.msra.mxu0 0.0
        %323 = vmatprep.subr.mxu0 0.0
        %324 = vmatpush1.msra.mxu0 0.0
        %325 = vmatprep.subr.mxu0 0.0
        %326 = vmatpush1.msra.mxu0 0.0
        %327 = vmatprep.mubr.f32.mxu0 0.0
        %328 = vmatmul.mubr.f32.gmra.mrb[0].mxu0 %v259
        %v329 = vpop.f32.mrb[0].mxu0
        %v330 = vadd.f32 0.0, %v329
        %v331 = vpop.f32.mrb[0].mxu0
        %332 = vmatprep.mubr.f32.mxu0 0.0
        %333 = vmatmul.mubr.f32.gmra.mrb[0].mxu0 %v260
        %v334 = vpop.f32.mrb[0].mxu0
        %v335 = vadd.f32 0.0, %v334
        %v336 = vpop.f32.mrb[0].mxu0
        %337 = vmatprep.mubr.f32.mxu0 0.0
        %338 = vmatmul.mubr.f32.gmra.mrb[0].mxu0 %v261
        %v339 = vpop.f32.mrb[0].mxu0
        %v340 = vadd.f32 0.0, %v339
        %v341 = vpop.f32.mrb[0].mxu0
        %342 = vmatprep.mubr.f32.mxu0 0.0
        %343 = vmatmul.mubr.f32.gmra.mrb[0].mxu0 %v262
        %v344 = vpop.f32.mrb[0].mxu0
        %v345 = vadd.f32 0.0, %v344
        %v346 = vpop.f32.mrb[0].mxu0
        %347 = vdwg.mxu0
        %vm348 = vcmask 261120
        %349 = vst.msk [vmem:[%s189] sm:$0xff] %vm348, %v330
        %350 = vst.msk [vmem:[%s189 + $0x8] sm:$0xff] %vm348, %v335
        %351 = vst.msk [vmem:[%s189 + $0x10] sm:$0xff] %vm348, %v340
        %vm352 = vcmask 254976
        %353 = vst.msk [vmem:[%s189 + $0x18] sm:$0x3] %vm352, %v345
      $region36: #{tpu_custom_call.1} parent=27 // pred_fallthru
        _
      %s354 = smul.u32 4, %s25
      %p355 = scmp.lt.s32.totalorder %s24, 1
      %s356 = scalar_select %p355, %s24, 1
      %p357 = scmp.lt.s32.totalorder %s354, 3
      %s358 = scalar_select %p357, %s354, 3
      %s359 = smul.addr %s356, 4
      %s360 = sadd.s32 %s358, %s359
      %s361 = smul.addr %s360, 8
      %s362 = scalar_lea.vmem %s3, %s361
      // Predicated region
      $region37: #{tpu_custom_call.1} parent=27 // pred_check
        %p363 = pneg %p104
      $region38: #{tpu_custom_call.1} parent=27 // pred_check_branch
        %365 = sbr.rel (%p363) target = $region40
      $region39: #{tpu_custom_call.1} parent=27 // pred_region
        %s366 = smul.u32 4, %s25
      $region40: #{tpu_custom_call.1} parent=27 // pred_fallthru
        _
    $region28: #{tpu_custom_call.1} parent=5 // pred_fallthru
      _
    %p367 = scmp.le.s32.totalorder 2, %s15
    // Predicated region
    $region41: #{tpu_custom_call.1} parent=5 // pred_check
      %p368 = pneg %p367
    $region42: #{tpu_custom_call.1} parent=5 // pred_check_branch
      %370 = sbr.rel (%p368) target = $region44
    $region43: #{tpu_custom_call.1} parent=5 // pred_region
      %s371 = ssub.s32 %s15, 2
      // Predicated region
      $region45: #{tpu_custom_call.1} parent=43 // pred_check
        %p372 = pneg %p110
      $region46: #{tpu_custom_call.1} parent=43 // pred_check_branch
        %374 = sbr.rel (%p372) target = $region48
      $region47: #{tpu_custom_call.1} parent=43 // pred_region
        %s375 = smul.u32 4, %s27
        %p376 = scmp.lt.s32.totalorder %s26, 1
        %s377 = scalar_select %p376, %s26, 1
        %p378 = scmp.lt.s32.totalorder %s375, 3
        %s379 = scalar_select %p378, %s375, 3
        %s380 = smul.addr %s377, 4
        %s381 = sadd.s32 %s379, %s380
        %s382 = smul.addr %s381, 8
        %s383 = scalar_lea.vmem %s3, %s382
      $region48: #{tpu_custom_call.1} parent=43 // pred_fallthru
        _
    $region44: #{tpu_custom_call.1} parent=5 // pred_fallthru
      _
  $region6: #{tpu_custom_call.1} parent=0 // loop_footer
    %s19 = sadd.s32 1, %s15
  $region7: #{tpu_custom_call.1} parent=0 // loop_footer_branch
    %14 = sbr.rel target = $region3
  $region8: #{tpu_custom_call.1} parent=0 // loop_exit
    _

</llo_original>
